<compile_context>
chip_gen: v6e
topology: v6e:2x2x1
jax: 0.10.0
libtpu: 0.0.40
codegen_flags: <defaults>
</compile_context>

<pallas_src>
import jax
import jax.numpy as jnp
from jax.experimental import pallas as pl
from jax.experimental.pallas import tpu as pltpu


def _pe_add_kernel(x_ref, pe_ref, o_ref):
    # x_ref:  (TB, TSD)  lane-dense batch/lane chunk
    # pe_ref: (1,  TSD)  positional-encoding chunk (sublane-broadcast over TB)
    # o_ref:  (TB, TSD)
    # Implicit (1, TSD) -> (TB, TSD) broadcast in the add; pure vld/vadd/vst,
    # VPU has ample slack for this mem-bound kernel.
    o_ref[...] = x_ref[...] + pe_ref[...]


def _round_up(x, m):
    return -(-x // m) * m


def _sublane_packing(itemsize):
    # 8 sublanes of 32-bit; sub-32-bit dtypes pack along sublanes.
    return max(8, 32 // max(1, itemsize))


def _vmem_capacity_bytes():
    try:
        info = pltpu.get_tpu_info()
        for name in ("vmem_capacity_bytes", "vmem_bytes", "vmem_size_bytes"):
            v = getattr(info, name, None)
            if v:
                return int(v)
    except Exception:
        pass
    return 64 << 20  # conservative default (v7x per-TC VMEM)


def _pick_sizes():
    """Chip-aware (target_block_bytes, vmem_limit_bytes)."""
    vmem_cap = _vmem_capacity_bytes()
    # v7x (64 MiB VMEM) -> 4 MiB blocks; v5e/v6e (128 MiB) -> 8 MiB blocks.
    target_block_bytes = max(2 << 20, min(8 << 20, vmem_cap // 16))
    # Budget: 2 x double-buffered blocks (x in + out) ~ 4x block, plus slack.
    vmem_limit = min(vmem_cap // 2, 64 << 20)
    return target_block_bytes, vmem_limit


def _choose_tiles(B, SD, itemsize, target_block_bytes):
    """Pick (tb, tsd) block dims for a (B, SD) lane-dense layout."""
    packing = _sublane_packing(itemsize)
    row_bytes = SD * itemsize

    if row_bytes > target_block_bytes and SD > 128:
        # Long rows: also tile the flattened S*D (lane) dim so double-buffered
        # in+out blocks never exceed VMEM (v7x's 64 MiB is the tightest).
        tb = B if B <= packing else packing
        tsd = (target_block_bytes // max(1, tb * itemsize)) // 128 * 128
        tsd = max(128, tsd)
        if tsd >= SD:
            tsd = SD
        return tb, tsd

    # Whole row per block (lane-dense, unmasked stores).
    tsd = SD
    tb = max(1, target_block_bytes // max(1, row_bytes))
    tb = max(packing, (tb // packing) * packing)
    if tb >= B:
        tb = B  # block dim == full array dim -> always legal
        # Keep >= 2 grid steps for modest batches so v7x's two TensorCores can
        # each take a share (measured no-op on 1-TC v5e/v6e).
        if B > packing:
            half = _round_up(-(-B // 2), packing)
            if half < B:
                tb = half
    else:
        # Best-effort: make the batch step count even for megacore balance.
        steps = -(-B // tb)
        if steps % 2 == 1 and steps > 1:
            cand = _round_up(-(-B // (steps + 1)), packing)
            if cand >= packing and (-(-B // cand)) % 2 == 0:
                tb = cand
    return tb, tsd


def positional_encoder_forward(x, pe, *, donate_x=False, min_pallas_bytes=1 << 20,
                               force_pallas=False):
    """x: (B, S, D), pe: (SeqLen, D) with SeqLen >= S. Returns x + pe[:S]."""
    B, S, D = x.shape
    # Match torch's type promotion for `x + pe` (e.g. bf16 x + f32 pe -> f32).
    out_dtype = jnp.promote_types(x.dtype, pe.dtype)
    itemsize = jnp.dtype(out_dtype).itemsize

    total_bytes = B * S * D * itemsize
    if not force_pallas and total_bytes < min_pallas_bytes:
        # Tiny inputs: pallas_call fixed cost dominates; let XLA fuse the add.
        return (x + pe[:S, :][None, :, :]).astype(out_dtype)

    SD = S * D
    # Layout plumbing (free reshapes of contiguous data): lane-dense (B, S*D).
    x_flat = x.astype(out_dtype).reshape(B, SD)
    # NOTE: callers reusing a fixed pe should hoist/cache this slice+cast+reshape
    # (under jit it is a tiny constant-shaped op either way).
    pe_flat = pe[:S, :].astype(out_dtype).reshape(1, SD)

    target_block_bytes, vmem_limit = _pick_sizes()
    tb, tsd = _choose_tiles(B, SD, itemsize, target_block_bytes)

    grid = (pl.cdiv(B, tb), pl.cdiv(SD, tsd))

    # Only alias when x genuinely has the output dtype and the caller donates it
    # through the enclosing jit; otherwise XLA would insert a defensive copy.
    alias = {0: 0} if (donate_x and x.dtype == out_dtype) else {}

    out_flat = pl.pallas_call(
        _pe_add_kernel,
        out_shape=jax.ShapeDtypeStruct((B, SD), out_dtype),
        grid_spec=pltpu.PrefetchScalarGridSpec(
            num_scalar_prefetch=0,
            grid=grid,
            in_specs=[
                pl.BlockSpec((tb, tsd), lambda b, sd: (b, sd)),   # streaming x chunks
                pl.BlockSpec((1, tsd), lambda b, sd: (0, sd)),    # matching pe chunk
            ],
            out_specs=pl.BlockSpec((tb, tsd), lambda b, sd: (b, sd)),
        ),
        compiler_params=pltpu.CompilerParams(
            # Both axes are independent; leading batch axis lets v7x's 2 TCs shard.
            dimension_semantics=("parallel", "parallel"),
            vmem_limit_bytes=vmem_limit,
        ),
        input_output_aliases=alias,
    )(x_flat, pe_flat)

    return out_flat.reshape(B, S, D)


if __name__ == "__main__":
    key = jax.random.PRNGKey(0)
    k_pe, k_x1, k_x2, k_x3 = jax.random.split(key, 4)

    SeqLen, lenWord = 51, 64  # module defaults

    # Deterministic parameter init mirroring self.pe.data.uniform_(0.0, 1.0)
    pe = jax.random.uniform(k_pe, (SeqLen, lenWord), dtype=jnp.float32,
                            minval=0.0, maxval=1.0)

    # Case 1: small shapes (B=2, S=8, D=64), forced through the Pallas path.
    x1 = jax.random.normal(k_x1, (2, 8, lenWord), dtype=jnp.float32)
    o1 = jax.block_until_ready(positional_encoder_forward(x1, pe, force_pallas=True))
    ref1 = x1 + pe[:8, :][None, :, :]
    assert o1.shape == x1.shape
    assert jnp.allclose(o1, ref1, atol=1e-6), "case1 mismatch vs reference"

    # Case 2: full SeqLen, modest batch -> exercises the multi-step (even) batch grid.
    x2 = jax.random.normal(k_x2, (16, SeqLen, lenWord), dtype=jnp.float32)
    o2 = jax.block_until_ready(positional_encoder_forward(x2, pe, force_pallas=True))
    ref2 = x2 + pe[:SeqLen, :][None, :, :]
    assert jnp.allclose(o2, ref2, atol=1e-6), "case2 mismatch vs reference"

    # Case 3: bf16 activations + f32 pe -> promoted f32 output (matches torch).
    x3 = jax.random.normal(k_x3, (2, 8, lenWord), dtype=jnp.bfloat16)
    o3 = jax.block_until_ready(positional_encoder_forward(x3, pe, force_pallas=True))
    ref3 = x3.astype(jnp.float32) + pe[:8, :][None, :, :]
    assert o3.dtype == jnp.float32
    assert jnp.allclose(o3, ref3, atol=1e-6), "case3 mismatch vs reference"

    # Case 4: tiny-input fallback path (XLA fused add).
    o4 = jax.block_until_ready(positional_encoder_forward(x1, pe))
    assert jnp.allclose(o4, ref1, atol=1e-6), "case4 mismatch vs reference"

    print("KERNEL_OK")
</pallas_src>

<mosaic_0001>
module attributes {stable_mosaic.version = 11 : i64} {
  func.func @_pe_add_kernel(%arg0: i32, %arg1: i32, %arg2: memref<2x512xf32, #tpu.memory_space<vmem>>, %arg3: memref<1x512xf32, #tpu.memory_space<vmem>>, %arg4: memref<2x512xf32, #tpu.memory_space<vmem>>) attributes {dimension_semantics = [#tpu.dimension_semantics<parallel>, #tpu.dimension_semantics<parallel>], iteration_bounds = array<i64: 1, 1>, scalar_prefetch = 0 : i64, scratch_operands = 0 : i64, tpu.core_type = #tpu.core_type<tc>, window_params = [{transform_indices = @transform_0, window_bounds = array<i64: 2, 512>}, {transform_indices = @transform_1, window_bounds = array<i64: 1, 512>}, {transform_indices = @transform_2, window_bounds = array<i64: 2, 512>}]} {
    %c0 = arith.constant 0 : index
    %c0_0 = arith.constant 0 : index
    %0 = vector.load %arg2[%c0, %c0_0] : memref<2x512xf32, #tpu.memory_space<vmem>>, vector<2x512xf32>
    %c0_1 = arith.constant 0 : index
    %c0_2 = arith.constant 0 : index
    %1 = vector.load %arg3[%c0_1, %c0_2] : memref<1x512xf32, #tpu.memory_space<vmem>>, vector<1x512xf32>
    %2 = vector.broadcast %1 : vector<1x512xf32> to vector<2x512xf32>
    %3 = arith.addf %0, %2 : vector<2x512xf32>
    %c0_3 = arith.constant 0 : index
    %c0_4 = arith.constant 0 : index
    %4 = vector.load %arg4[%c0_3, %c0_4] : memref<2x512xf32, #tpu.memory_space<vmem>>, vector<2x512xf32>
    tpu.vector_store %arg4[%c0_3, %c0_4], %3 {strides = array<i32>} : memref<2x512xf32, #tpu.memory_space<vmem>>, vector<2x512xf32>,
    return
  }
  func.func @transform_0(%arg0: i32, %arg1: i32) -> (i32, i32) {
    %c0_i32 = arith.constant 0 : i32
    return %arg0, %arg1 : i32, i32
  }
  func.func @transform_1(%arg0: i32, %arg1: i32) -> (i32, i32) {
    %c0_i32 = arith.constant 0 : i32
    %c0_i32_0 = arith.constant 0 : i32
    return %c0_i32, %arg1 : i32, i32
  }
  func.func @transform_2(%arg0: i32, %arg1: i32) -> (i32, i32) {
    %c0_i32 = arith.constant 0 : i32
    return %arg0, %arg1 : i32, i32
  }
}

</mosaic_0001>

<llo_original>
// kernel: tpu_custom_call.1
$region0: #{tpu_custom_call.1}
  #allocation0 [shape = 'u32[]', space=smem, size = 0x4, offset = 0x4, fixed_abs, tag = 'smem constant byte address 0x4 - core index']
  #allocation1 [shape = 'u32[144,128]{1,0:T(1,128)}', space=vmem, size = 0x12000, scoped, tag = 'internal scratch']
  %s0 = inlined_call_operand.hbm [shape: f32[2,512], index: 0, kind: input, shape index: {}]
  %s1 = inlined_call_operand.hbm [shape: f32[1,512], index: 1, kind: input, shape index: {}]
  %s2 = inlined_call_operand.hbm [shape: f32[2,512], index: 2, kind: output, shape index: {}]
  %s3 = sld [smem:[#allocation0]]
  $region26: #{tpu_custom_call.1} parent=0
    _
  %s5 = ssub.s32 1, %s3
  %s6 = scalar_select 0, %s5, %s3
  $region1: #{tpu_custom_call.1} parent=0
    #allocation2 [shape = 'u8[4096]{0}', space=vmem, size = 0x1000, scoped, tag = 'input window, operand 0, single buffered']
    #allocation3 [shape = 's32[1]{0}', space=sflag, size = 0x4, scoped, tag = 'scoped memory for tpu_custom_call.1']
    #allocation4 [shape = 's32[1]{0}', space=sflag, size = 0x4, scoped, tag = 'scoped memory for tpu_custom_call.1']
    #allocation5 [shape = 'u8[2048]{0}', space=vmem, size = 0x800, scoped, tag = 'input window, operand 1, single buffered']
    #allocation6 [shape = 's32[1]{0}', space=sflag, size = 0x4, scoped, tag = 'scoped memory for tpu_custom_call.1']
    #allocation7 [shape = 'u8[4096]{0}', space=vmem, size = 0x1000, scoped, tag = 'output window, operand 0, single buffered']
    %7 = vsyncpa [#allocation3], 0
    %8 = vsyncpa [#allocation6], 0
    %9 = vsyncpa [#allocation4], 0
    // Predicated region
    $region2: #{tpu_custom_call.1} parent=1 // pred_check
      _
    $region3: #{tpu_custom_call.1} parent=1 // pred_check_branch
      %11 = sbr.rel (0) target = $region5
    $region4: #{tpu_custom_call.1} parent=1 // pred_region
      %s13 = ssub.s32 128, 128
      %14 = vsyncadd [#allocation3], %s13
      %s16 = sshll.u32 [#allocation2], 4
      %s17 = int_to_ptr.vmem [resolvable:$true] %s16
      %19 = dma.hbm_to_vmem [thread:$0]  %s0, 128, %s17, [#allocation3]
    $region5: #{tpu_custom_call.1} parent=1 // pred_fallthru
      _
    // Predicated region
    $region6: #{tpu_custom_call.1} parent=1 // pred_check
      _
    $region7: #{tpu_custom_call.1} parent=1 // pred_check_branch
      %21 = sbr.rel (0) target = $region9
    $region8: #{tpu_custom_call.1} parent=1 // pred_region
      %s23 = ssub.s32 64, 64
      %24 = vsyncadd [#allocation6], %s23
      %s26 = sshll.u32 [#allocation5], 4
      %s27 = int_to_ptr.vmem [resolvable:$true] %s26
      %29 = dma.hbm_to_vmem [thread:$0]  %s1, 64, %s27, [#allocation6]
    $region9: #{tpu_custom_call.1} parent=1 // pred_fallthru
      _
    // Predicated region
    $region10: #{tpu_custom_call.1} parent=1 // pred_check
      _
    $region11: #{tpu_custom_call.1} parent=1 // pred_check_branch
      %31 = sbr.rel (0) target = $region13
    $region12: #{tpu_custom_call.1} parent=1 // pred_region
      %32 = dma.done [#allocation3], 128
    $region13: #{tpu_custom_call.1} parent=1 // pred_fallthru
      _
    // Predicated region
    $region14: #{tpu_custom_call.1} parent=1 // pred_check
      _
    $region15: #{tpu_custom_call.1} parent=1 // pred_check_branch
      %34 = sbr.rel (0) target = $region17
    $region16: #{tpu_custom_call.1} parent=1 // pred_region
      %35 = dma.done [#allocation6], 64
    $region17: #{tpu_custom_call.1} parent=1 // pred_fallthru
      _
    %v36 = vld [vmem:[#allocation2] sm:$0xff]
    %v37 = vld [vmem:[#allocation5] sm:$0xf]
    %v39 = vlaneseq
    %v40 = vshrl.u32 %v39, 7
    %v41 = vsub.s32 0, %v40
    %v42 = vrot.slane %v37, %v41
    %v43 = vlaneseq
    %v44 = vshrl.u32 %v43, 7
    %v45 = vsub.s32 1, %v44
    %v46 = vrot.slane %v37, %v45
    %v47 = vlaneseq
    %v48 = vshrl.u32 %v47, 7
    %v49 = vsub.s32 2, %v48
    %v50 = vrot.slane %v37, %v49
    %v51 = vlaneseq
    %v52 = vshrl.u32 %v51, 7
    %v53 = vsub.s32 3, %v52
    %v54 = vrot.slane %v37, %v53
    %v55 = vcombine.low %v42, %v46
    %v56 = vcombine.low %v50, %v54
    %v58 = vunpack.c.l.s4 1983009808
    %v59 = vunpack.c.0.s8 %v58
    %v60 = vlaneseq
    %v61 = vshrl.u32 %v60, 7
    %v62 = vsub.s32 %v59, %v61
    %v63 = vrot.slane %v55, %v62
    %v65 = vunpack.c.l.s4 1983009808
    %v66 = vunpack.c.0.s8 %v65
    %v67 = vlaneseq
    %v68 = vshrl.u32 %v67, 7
    %v69 = vsub.s32 %v66, %v68
    %v70 = vrot.slane %v56, %v69
    %v71 = vcombine.low %v63, %v70
    %v73 = vadd.f32 %v36, %v71
    %74 = vst [vmem:[#allocation7] sm:$0xff] %v73
    // Predicated region
    $region18: #{tpu_custom_call.1} parent=1 // pred_check
      _
    $region19: #{tpu_custom_call.1} parent=1 // pred_check_branch
      %76 = sbr.rel (0) target = $region21
    $region20: #{tpu_custom_call.1} parent=1 // pred_region
      %s78 = ssub.s32 128, 128
      %79 = vsyncadd [#allocation4], %s78
      %s81 = sshll.u32 [#allocation7], 4
      %s82 = int_to_ptr.vmem [resolvable:$true] %s81
      %84 = dma.vmem_to_hbm [thread:$0]  %s82, 128, %s2, [#allocation4]
    $region21: #{tpu_custom_call.1} parent=1 // pred_fallthru
      _
    // Predicated region
    $region22: #{tpu_custom_call.1} parent=1 // pred_check
      _
    $region23: #{tpu_custom_call.1} parent=1 // pred_check_branch
      %86 = sbr.rel (0) target = $region25
    $region24: #{tpu_custom_call.1} parent=1 // pred_region
      %87 = dma.done [#allocation4], 128
    $region25: #{tpu_custom_call.1} parent=1 // pred_fallthru
      _
    %88 = vsyncpa [#allocation3], 1
    %89 = vsyncpa [#allocation6], 1
    %90 = vsyncpa [#allocation4], 1

</llo_original>
